<compile_context>
chip_gen: v6e
topology: v6e:2x2x1
jax: 0.10.0
libtpu: 0.0.40
codegen_flags: <defaults>
</compile_context>

<pallas_src>
import math

import jax
import jax.numpy as jnp
from jax import lax
from jax.experimental import pallas as pl
from jax.experimental.pallas import tpu as pltpu


_TEMP_SLAB_BYTES = 4 * 1024 * 1024     # max f32 working slab created in-kernel
_OUT_TILE_BUDGET = 4 * 1024 * 1024     # cap on the (TBC, D) output tile


def _budgets():
    """(target input-tile bytes, vmem_limit_bytes), derived from the chip."""
    cap = 64 * 1024 * 1024                     # conservative (v7x-sized) default
    try:
        info = pltpu.get_tpu_info()
        c = getattr(info, "vmem_capacity_bytes", None)
        if c:
            cap = int(c)
    except Exception:
        pass
    if cap >= 128 * 1024 * 1024:               # v5e / v6e
        return 16 * 1024 * 1024, 64 * 1024 * 1024
    return 8 * 1024 * 1024, 40 * 1024 * 1024   # v7x (64 MiB VMEM) / unknown


def _choose_tiles(bc, s, d, itemsize, target_bytes, allow_full_s):
    """Pick (TBC, TS) for blocks of the (BC, S, D) flattened input.

    (8,128) rule: last two block dims must be multiples of (8,128) or equal the
    full array dims.  We never tile D, and TS is a multiple of 8 or == S.
    """
    row_bytes = s * d * itemsize
    if allow_full_s:
        tbc_cap = max(8, (_OUT_TILE_BUDGET // (d * 4)) // 8 * 8)
        if bc * row_bytes <= target_bytes and bc <= tbc_cap:
            return bc, s                                    # whole problem / block
        if 8 * row_bytes <= target_bytes:
            tbc = (target_bytes // row_bytes) // 8 * 8       # >= 8 (no round-up!)
            tbc = min(tbc, tbc_cap, bc)
            return tbc, s
    # S-tiled path: 8 batch rows per block, tile the reduction axis.
    tbc = bc if bc < 8 else 8
    ts = target_bytes // max(1, tbc * d * itemsize)
    if ts >= s:
        return tbc, s
    ts = max(8, ts // 8 * 8)
    return tbc, min(ts, s)


def _make_kernel_a(oper, s_div, narrow, chb, tbc):
    """Single-step kernel: full reduction axis per block, grid over BC only."""
    inv = 1.0 / float(s_div)
    chunked = narrow and oper != "max"   # avoid a full-tile f32 copy for bf16/fp8

    def reduce_slab(x):                  # x: (rows, S, D) value; reduce axis 1
        if oper == "max":
            return jnp.max(x, axis=1)                       # native dtype, no cast
        r = jnp.sum(x.astype(jnp.float32), axis=1)          # f32 accumulation
        if oper == "mean":
            r = r * inv
        return r

    if not chunked:
        def kernel(x_ref, o_ref):
            o_ref[...] = reduce_slab(x_ref[...]).astype(o_ref.dtype)
        return kernel

    n_full, rem = divmod(tbc, chb)

    def kernel(x_ref, o_ref):
        def emit(r0, nrows):
            red = reduce_slab(x_ref[pl.ds(r0, nrows), :, :])
            o_ref[pl.ds(r0, nrows), :] = red.astype(o_ref.dtype)

        if n_full == 1 and rem == 0:
            emit(0, chb)
        else:
            if n_full > 0:
                def body(i, carry):
                    emit(pl.multiple_of(i * chb, chb), chb)
                    return carry
                lax.fori_loop(0, n_full, body, 0, unroll=(n_full <= 8))
            if rem > 0:
                emit(n_full * chb, rem)

    return kernel


def _make_kernel_b(oper, ts, s_total, s_div, s_chunk, narrow):
    """S-tiled kernel: VMEM accumulator across the last ('arbitrary') grid axis."""
    inv = 1.0 / float(s_div)
    rem_s = s_total % ts                 # rows in the ragged last S block (0 = none)
    init_val = -jnp.inf if oper == "max" else 0.0

    def sum_rows_f32(x_ref, s_len):
        rows, _, d = x_ref.shape
        if (not narrow) or s_len <= s_chunk:
            return jnp.sum(x_ref[:, pl.ds(0, s_len), :].astype(jnp.float32), axis=1)
        n_full, rem = divmod(s_len, s_chunk)

        def body(i, a):
            off = pl.multiple_of(i * s_chunk, s_chunk)
            xc = x_ref[:, pl.ds(off, s_chunk), :].astype(jnp.float32)
            return a + jnp.sum(xc, axis=1)

        acc = lax.fori_loop(0, n_full, body, jnp.zeros((rows, d), jnp.float32),
                            unroll=(n_full <= 8))
        if rem > 0:
            xc = x_ref[:, pl.ds(n_full * s_chunk, rem), :].astype(jnp.float32)
            acc = acc + jnp.sum(xc, axis=1)
        return acc

    def kernel(x_ref, o_ref, acc_ref):
        k = pl.program_id(1)
        nk = pl.num_programs(1)

        @pl.when(k == 0)
        def _init():
            acc_ref[...] = jnp.full(acc_ref.shape, init_val, acc_ref.dtype)

        def accumulate(s_len):
            if oper == "max":
                part = jnp.max(x_ref[:, pl.ds(0, s_len), :], axis=1)
                acc_ref[...] = jnp.maximum(acc_ref[...], part)
            else:
                acc_ref[...] = acc_ref[...] + sum_rows_f32(x_ref, s_len)

        if rem_s == 0:
            accumulate(ts)                       # no masking anywhere
        else:
            @pl.when(k < nk - 1)
            def _full_blocks():
                accumulate(ts)                   # unmasked full blocks

            @pl.when(k == nk - 1)
            def _ragged_last():
                accumulate(rem_s)                # only the valid rows; no mask

        @pl.when(k == nk - 1)
        def _finalize():
            res = acc_ref[...]
            if oper == "mean":
                res = res * inv
            o_ref[...] = res.astype(o_ref.dtype)

    return kernel


def aggregator(x: jax.Array, oper: str, dim: int = 2, *,
               tile_bc: int | None = None, tile_s: int | None = None,
               s_chunk: int | None = None) -> jax.Array:
    """Pallas equivalent of Aggregator.forward(x, dim), keepdim=False."""
    assert oper in ("mean", "sum", "max")
    if not jnp.issubdtype(x.dtype, jnp.floating):
        # TODO(synk): integer inputs would need integer accumulators to match
        # torch's integer-sum semantics; only float dtypes are handled here.
        raise NotImplementedError("aggregator: floating-point inputs only")

    nd = x.ndim
    ax = dim % nd
    shape = x.shape
    if ax == nd - 1:
        # TODO(synk): reduction over the last (lane) axis needs a transposed
        # kernel layout; fall back to XLA for that rare configuration.
        if oper == "mean":
            return jnp.mean(x, axis=ax)
        if oper == "sum":
            return jnp.sum(x, axis=ax)
        return jnp.max(x, axis=ax)

    lead = math.prod(shape[:ax]) if ax > 0 else 1
    s = shape[ax]
    trail = math.prod(shape[ax + 1:])
    out_final_shape = shape[:ax] + shape[ax + 1:]

    # Lane densification: fold g adjacent reduction rows into the lane axis so
    # the kernel works on (BC, S/g, g*D) with g*D as close to 128 as possible.
    # Free (contiguity-preserving) reshape; the g partials are combined by a
    # tiny XLA reduce afterwards.
    g = 1
    if trail < 128 and s > 1:
        for cand in range(min(128 // max(trail, 1), s // 2), 1, -1):
            if s % cand == 0:
                g = cand
                break
    s_eff = s // g
    d_eff = trail * g
    BC = lead
    x2 = x.reshape(BC, s_eff, d_eff)

    itemsize = x.dtype.itemsize
    narrow = itemsize < 4
    target_bytes, vmem_limit = _budgets()

    # Single-step (full-S) blocks are only allowed when the in-kernel f32
    # chunk slab (>= 8 rows x full S) fits the temp budget; otherwise the
    # S-tiled kernel bounds the slab via its S chunking.
    allow_full_s = (oper == "max") or (not narrow) or (
        8 * s_eff * d_eff * 4 <= _TEMP_SLAB_BYTES)
    tbc, ts = _choose_tiles(BC, s_eff, d_eff, itemsize, target_bytes, allow_full_s)
    if tile_bc is not None:
        tbc = max(1, min(int(tile_bc), BC))
    if tile_s is not None:
        ts = max(1, min(int(tile_s), s_eff))
    use_single = allow_full_s and (ts == s_eff)

    # Keep >= 2 blocks on the fused batch axis so both v7x TensorCores get work
    # when the whole problem would otherwise fit a single block.
    if use_single and tile_bc is None and BC >= 16 and pl.cdiv(BC, tbc) == 1:
        tbc = min(BC, (((BC + 1) // 2) + 7) // 8 * 8)

    grid_bc = pl.cdiv(BC, tbc)

    partial_dtype = x.dtype if (oper == "max" or g == 1) else jnp.float32
    cost = pl.CostEstimate(
        flops=BC * s_eff * d_eff,
        transcendentals=0,
        bytes_accessed=BC * s_eff * d_eff * itemsize
        + BC * d_eff * jnp.dtype(partial_dtype).itemsize,
    )
    out_sds = jax.ShapeDtypeStruct((BC, d_eff), partial_dtype)

    if use_single:
        chb = tbc
        if narrow and oper != "max":
            chb = min(tbc, max(8, (_TEMP_SLAB_BYTES // (s_eff * d_eff * 4)) // 8 * 8))
        out_flat = pl.pallas_call(
            _make_kernel_a(oper, s, narrow, chb, tbc),
            out_shape=out_sds,
            grid=(grid_bc,),
            in_specs=[pl.BlockSpec((tbc, s_eff, d_eff), lambda i: (i, 0, 0))],
            out_specs=pl.BlockSpec((tbc, d_eff), lambda i: (i, 0)),
            compiler_params=pltpu.CompilerParams(
                dimension_semantics=("parallel",),
                vmem_limit_bytes=vmem_limit),
            cost_estimate=cost,
        )(x2)
    else:
        grid_s = pl.cdiv(s_eff, ts)
        sc = int(s_chunk) if s_chunk is not None else max(
            8, (_TEMP_SLAB_BYTES // (tbc * d_eff * 4)) // 8 * 8)
        acc_dtype = x.dtype if oper == "max" else jnp.float32
        out_flat = pl.pallas_call(
            _make_kernel_b(oper, ts, s_eff, s, sc, narrow),
            out_shape=out_sds,
            grid=(grid_bc, grid_s),
            in_specs=[pl.BlockSpec((tbc, ts, d_eff), lambda i, k: (i, k, 0))],
            out_specs=pl.BlockSpec((tbc, d_eff), lambda i, k: (i, 0)),
            scratch_shapes=[pltpu.VMEM((tbc, d_eff), acc_dtype)],
            compiler_params=pltpu.CompilerParams(
                dimension_semantics=("parallel", "arbitrary"),
                vmem_limit_bytes=vmem_limit),
            cost_estimate=cost,
        )(x2)

    if g > 1:
        parts = out_flat.reshape(BC, g, trail)
        out_flat = jnp.max(parts, axis=1) if oper == "max" else jnp.sum(parts, axis=1)

    return out_flat.astype(x.dtype).reshape(out_final_shape)


def _reference(x, oper, dim=2):
    xf = x.astype(jnp.float32)
    if oper == "mean":
        return jnp.mean(xf, axis=dim)
    if oper == "sum":
        return jnp.sum(xf, axis=dim)
    return jnp.max(xf, axis=dim)


if __name__ == "__main__":
    failures = []

    def check(name, x, oper, dim=2, tol=1e-5, **kw):
        out = aggregator(x, oper, dim=dim, **kw)
        jax.block_until_ready(out)
        ref = _reference(x, oper, dim=dim)
        good = (out.shape == ref.shape) and bool(
            jnp.allclose(out.astype(jnp.float32), ref, atol=tol, rtol=tol))
        if not good:
            failures.append(f"{name} oper={oper}")

    key = jax.random.PRNGKey(0)

    # 1) Module-default-like shapes: (B, C, S, D) = (2, 4, 16, 32), f32.
    #    D=32 < 128 -> lane-densified (g=4), single-step path.
    x1 = jax.random.normal(key, (2, 4, 16, 32), dtype=jnp.float32)
    for op in ("mean", "sum", "max"):
        check("f32 densified single-step", x1, op)

    # 2) S-tiled accumulator path with a ragged last S block (S=24, TS=16) and
    #    a partial block on the fused BC axis (BC=9, TBC=8).
    x2 = jax.random.normal(jax.random.PRNGKey(0), (3, 3, 24, 128), dtype=jnp.float32)
    for op in ("mean", "sum", "max"):
        check("f32 S-tiled", x2, op, tile_bc=8, tile_s=16)

    # 3) Narrow dtype (bf16) single-step path: chunked f32 accumulation for
    #    sum/mean, native-dtype reduce for max.
    x3 = x1.astype(jnp.bfloat16)
    for op in ("mean", "sum", "max"):
        check("bf16 densified single-step", x3, op, tol=2e-2)

    # 4) Narrow dtype S-tiled path with in-kernel S chunking (s_chunk=8).
    x4 = x2.astype(jnp.bfloat16)
    for op in ("mean", "sum", "max"):
        check("bf16 S-tiled chunked", x4, op, tile_bc=8, tile_s=16, s_chunk=8,
              tol=2e-2)

    # 5) Small D that cannot be densified (S=7 has no usable fold factor).
    x5 = jax.random.normal(jax.random.PRNGKey(0), (2, 2, 7, 24), dtype=jnp.float32)
    for op in ("mean", "sum", "max"):
        check("f32 small-D no-densify", x5, op)

    # 6) Generalized dim: 3-D input reduced over dim=1.
    x6 = jax.random.normal(jax.random.PRNGKey(0), (2, 10, 16), dtype=jnp.float32)
    check("f32 3-D dim=1", x6, "sum", dim=1)

    if failures:
        for f in failures:
            print("MISMATCH:", f)
    else:
        print("KERNEL_OK")
</pallas_src>

<mosaic_0001>
module attributes {stable_mosaic.version = 11 : i64} {
  func.func @kernel(%arg0: i32, %arg1: memref<8x4x128xf32, #tpu.memory_space<vmem>>, %arg2: memref<8x128xf32, #tpu.memory_space<vmem>>) attributes {dimension_semantics = [#tpu.dimension_semantics<parallel>], iteration_bounds = array<i64: 1>, scalar_prefetch = 0 : i64, scratch_operands = 0 : i64, tpu.core_type = #tpu.core_type<tc>, window_params = [{transform_indices = @transform_0, window_bounds = array<i64: 8, 4, 128>}, {transform_indices = @transform_1, window_bounds = array<i64: 8, 128>}]} {
    %c0 = arith.constant 0 : index
    %c0_0 = arith.constant 0 : index
    %c0_1 = arith.constant 0 : index
    %0 = vector.load %arg1[%c0, %c0_0, %c0_1] : memref<8x4x128xf32, #tpu.memory_space<vmem>>, vector<8x4x128xf32>
    %cst = arith.constant dense<0.000000e+00> : vector<8x128xf32>
    %1 = vector.multi_reduction <add>, %0, %cst [1] : vector<8x4x128xf32> to vector<8x128xf32>
    %cst_2 = arith.constant 6.250000e-02 : f32
    %2 = vector.broadcast %cst_2 : f32 to vector<8x128xf32>
    %3 = arith.mulf %1, %2 : vector<8x128xf32>
    %c0_3 = arith.constant 0 : index
    %c0_4 = arith.constant 0 : index
    %4 = vector.load %arg2[%c0_3, %c0_4] : memref<8x128xf32, #tpu.memory_space<vmem>>, vector<8x128xf32>
    tpu.vector_store %arg2[%c0_3, %c0_4], %3 {strides = array<i32>} : memref<8x128xf32, #tpu.memory_space<vmem>>, vector<8x128xf32>,
    return
  }
  func.func @transform_0(%arg0: i32) -> (i32, i32, i32) {
    %c0_i32 = arith.constant 0 : i32
    %c0_i32_0 = arith.constant 0 : i32
    %c0_i32_1 = arith.constant 0 : i32
    return %arg0, %c0_i32, %c0_i32_0 : i32, i32, i32
  }
  func.func @transform_1(%arg0: i32) -> (i32, i32) {
    %c0_i32 = arith.constant 0 : i32
    %c0_i32_0 = arith.constant 0 : i32
    return %arg0, %c0_i32 : i32, i32
  }
}

</mosaic_0001>

<llo_original>
// kernel: tpu_custom_call.1
$region0: #{tpu_custom_call.1}
  #allocation0 [shape = 'u32[]', space=smem, size = 0x4, offset = 0x4, fixed_abs, tag = 'smem constant byte address 0x4 - core index']
  #allocation1 [shape = 'u32[144,128]{1,0:T(1,128)}', space=vmem, size = 0x12000, scoped, tag = 'internal scratch']
  %s0 = inlined_call_operand.hbm [shape: f32[8,4,128], index: 0, kind: input, shape index: {}]
  %s1 = inlined_call_operand.hbm [shape: f32[8,128], index: 1, kind: output, shape index: {}]
  %s2 = sld [smem:[#allocation0]]
  $region18: #{tpu_custom_call.1} parent=0
    _
  %s4 = ssub.s32 1, %s2
  %s5 = scalar_select 0, %s4, %s2
  $region1: #{tpu_custom_call.1} parent=0
    #allocation2 [shape = 'u8[16384]{0}', space=vmem, size = 0x4000, scoped, tag = 'input window, operand 0, single buffered']
    #allocation3 [shape = 's32[1]{0}', space=sflag, size = 0x4, scoped, tag = 'scoped memory for tpu_custom_call.1']
    #allocation4 [shape = 's32[1]{0}', space=sflag, size = 0x4, scoped, tag = 'scoped memory for tpu_custom_call.1']
    #allocation5 [shape = 'u8[4096]{0}', space=vmem, size = 0x1000, scoped, tag = 'output window, operand 0, single buffered']
    %6 = vsyncpa [#allocation3], 0
    %7 = vsyncpa [#allocation4], 0
    // Predicated region
    $region2: #{tpu_custom_call.1} parent=1 // pred_check
      _
    $region3: #{tpu_custom_call.1} parent=1 // pred_check_branch
      %9 = sbr.rel (0) target = $region5
    $region4: #{tpu_custom_call.1} parent=1 // pred_region
      %s11 = ssub.s32 512, 512
      %12 = vsyncadd [#allocation3], %s11
      %s13 = sshll.u32 [#allocation2], 4
      %s14 = int_to_ptr.vmem [resolvable:$true] %s13
      %19 = dma.hbm_to_vmem [thread:$0]  %s0, 512, %s14, [#allocation3], 64, 64, 4
    $region5: #{tpu_custom_call.1} parent=1 // pred_fallthru
      _
    // Predicated region
    $region6: #{tpu_custom_call.1} parent=1 // pred_check
      _
    $region7: #{tpu_custom_call.1} parent=1 // pred_check_branch
      %21 = sbr.rel (0) target = $region9
    $region8: #{tpu_custom_call.1} parent=1 // pred_region
      %22 = dma.done [#allocation3], 512
    $region9: #{tpu_custom_call.1} parent=1 // pred_fallthru
      _
    %v23 = vld [vmem:[#allocation2] sm:$0xf]
    %v24 = vld [vmem:[#allocation2 + $0x4] sm:$0xf]
    %v25 = vld [vmem:[#allocation2 + $0x8] sm:$0xf]
    %v26 = vld [vmem:[#allocation2 + $0xc] sm:$0xf]
    %v27 = vld [vmem:[#allocation2 + $0x10] sm:$0xf]
    %v28 = vld [vmem:[#allocation2 + $0x14] sm:$0xf]
    %v29 = vld [vmem:[#allocation2 + $0x18] sm:$0xf]
    %v30 = vld [vmem:[#allocation2 + $0x1c] sm:$0xf]
    %vm31 = vcmask 1043456
    %v32 = vsel %vm31, %v23, 0.0
    %v33 = vrot.slane %v32, 4
    %v34 = vadd.f32 %v32, %v33
    %v35 = vrot.slane %v34, 2
    %v36 = vadd.f32 %v34, %v35
    %v37 = vrot.slane %v36, 1
    %v38 = vadd.f32 %v36, %v37
    %v39 = vsel %vm31, %v24, 0.0
    %v40 = vrot.slane %v39, 4
    %v41 = vadd.f32 %v39, %v40
    %v42 = vrot.slane %v41, 2
    %v43 = vadd.f32 %v41, %v42
    %v44 = vrot.slane %v43, 1
    %v45 = vadd.f32 %v43, %v44
    %v46 = vsel %vm31, %v25, 0.0
    %v47 = vrot.slane %v46, 4
    %v48 = vadd.f32 %v46, %v47
    %v49 = vrot.slane %v48, 2
    %v50 = vadd.f32 %v48, %v49
    %v51 = vrot.slane %v50, 1
    %v52 = vadd.f32 %v50, %v51
    %v53 = vsel %vm31, %v26, 0.0
    %v54 = vrot.slane %v53, 4
    %v55 = vadd.f32 %v53, %v54
    %v56 = vrot.slane %v55, 2
    %v57 = vadd.f32 %v55, %v56
    %v58 = vrot.slane %v57, 1
    %v59 = vadd.f32 %v57, %v58
    %v60 = vsel %vm31, %v27, 0.0
    %v61 = vrot.slane %v60, 4
    %v62 = vadd.f32 %v60, %v61
    %v63 = vrot.slane %v62, 2
    %v64 = vadd.f32 %v62, %v63
    %v65 = vrot.slane %v64, 1
    %v66 = vadd.f32 %v64, %v65
    %v67 = vsel %vm31, %v28, 0.0
    %v68 = vrot.slane %v67, 4
    %v69 = vadd.f32 %v67, %v68
    %v70 = vrot.slane %v69, 2
    %v71 = vadd.f32 %v69, %v70
    %v72 = vrot.slane %v71, 1
    %v73 = vadd.f32 %v71, %v72
    %v74 = vsel %vm31, %v29, 0.0
    %v75 = vrot.slane %v74, 4
    %v76 = vadd.f32 %v74, %v75
    %v77 = vrot.slane %v76, 2
    %v78 = vadd.f32 %v76, %v77
    %v79 = vrot.slane %v78, 1
    %v80 = vadd.f32 %v78, %v79
    %v81 = vsel %vm31, %v30, 0.0
    %v82 = vrot.slane %v81, 4
    %v83 = vadd.f32 %v81, %v82
    %v84 = vrot.slane %v83, 2
    %v85 = vadd.f32 %v83, %v84
    %v86 = vrot.slane %v85, 1
    %v87 = vadd.f32 %v85, %v86
    %v88 = vmul.f32 %v38, 0.0625
    %v89 = vmul.f32 %v45, 0.0625
    %v90 = vmul.f32 %v52, 0.0625
    %v91 = vmul.f32 %v59, 0.0625
    %v92 = vmul.f32 %v66, 0.0625
    %v93 = vmul.f32 %v73, 0.0625
    %v94 = vmul.f32 %v80, 0.0625
    %v95 = vmul.f32 %v87, 0.0625
    %vm104 = vcmask 1041409
    %v105 = vsel %vm104, %v89, %v88
    %vm106 = vcmask 1042434
    %v107 = vsel %vm106, %v90, %v105
    %vm108 = vcmask 1043459
    %v109 = vsel %vm108, %v91, %v107
    %vm110 = vcmask 1044484
    %v111 = vsel %vm110, %v92, %v109
    %vm112 = vcmask 1045509
    %v113 = vsel %vm112, %v93, %v111
    %vm114 = vcmask 1046534
    %v115 = vsel %vm114, %v94, %v113
    %vm116 = vcmask 1047559
    %v117 = vsel %vm116, %v95, %v115
    %119 = vst [vmem:[#allocation5] sm:$0xff] %v117
    // Predicated region
    $region10: #{tpu_custom_call.1} parent=1 // pred_check
      _
    $region11: #{tpu_custom_call.1} parent=1 // pred_check_branch
      %121 = sbr.rel (0) target = $region13
    $region12: #{tpu_custom_call.1} parent=1 // pred_region
      %s123 = ssub.s32 128, 128
      %124 = vsyncadd [#allocation4], %s123
      %s126 = sshll.u32 [#allocation5], 4
      %s127 = int_to_ptr.vmem [resolvable:$true] %s126
      %129 = dma.vmem_to_hbm [thread:$0]  %s127, 128, %s1, [#allocation4]
    $region13: #{tpu_custom_call.1} parent=1 // pred_fallthru
      _
    // Predicated region
    $region14: #{tpu_custom_call.1} parent=1 // pred_check
      _
    $region15: #{tpu_custom_call.1} parent=1 // pred_check_branch
      %131 = sbr.rel (0) target = $region17
    $region16: #{tpu_custom_call.1} parent=1 // pred_region
      %132 = dma.done [#allocation4], 128
    $region17: #{tpu_custom_call.1} parent=1 // pred_fallthru
      _
    %133 = vsyncpa [#allocation3], 1
    %134 = vsyncpa [#allocation4], 1

</llo_original>
